<compile_context>
chip_gen: v5e
topology: v5e:2x2
jax: 0.10.0
libtpu: 0.0.40
codegen_flags: <defaults>
</compile_context>

<pallas_src>
import functools

import jax
import jax.numpy as jnp
from jax.experimental import pallas as pl
from jax.experimental.pallas import tpu as pltpu

_EPS = 1e-5
_ROW_TILE_CAP = 256      # sublane-axis tile cap
_COL_TILE_CAP = 2048     # lane-axis tile cap (multiple of 128)


def _pick_tile(dim, unit, cap):
    """Largest multiple of `unit` that divides `dim` and is <= cap, else full dim."""
    if dim <= cap or dim % unit != 0:
        return dim
    best = unit
    for cand in range(unit, cap + 1, unit):
        if dim % cand == 0:
            best = cand
    return best


def _row_unit(itemsize):
    # sublane packing: f32 -> 8, bf16/f16 -> 16, int8/fp8 -> 32
    return {4: 8, 2: 16, 1: 32}.get(int(itemsize), 8)


def _compiler_params(semantics, n_streams, tr, tc, itemsize):
    block_bytes = tr * tc * int(itemsize)
    # double-buffered streams + headroom, clamped to a budget that is safe on
    # v5e/v6e (128 MiB physical) and v7x (64 MiB physical).
    limit = int(min(max(3 * n_streams * block_bytes, 32 << 20), 48 << 20))
    return pltpu.CompilerParams(dimension_semantics=semantics,
                                vmem_limit_bytes=limit)


# ---------------------------------------------------------------------------
# Pass 1: per-row (row = n*C + c) sum / sum-of-squares of x and skip.
# Grid: (row tiles ["parallel"], HW tiles ["arbitrary" accumulation]).
# ---------------------------------------------------------------------------
def _stats_kernel(x_ref, skip_ref, sx_ref, sxx_ref, sk_ref, skk_ref):
    @pl.when(pl.program_id(1) == 0)
    def _():
        sx_ref[...] = jnp.zeros_like(sx_ref)
        sxx_ref[...] = jnp.zeros_like(sxx_ref)
        sk_ref[...] = jnp.zeros_like(sk_ref)
        skk_ref[...] = jnp.zeros_like(skk_ref)

    x = x_ref[...].astype(jnp.float32)      # f32 accumulation, per-tile only
    s = skip_ref[...].astype(jnp.float32)
    sx_ref[...] += jnp.sum(x, axis=1, keepdims=True)
    sxx_ref[...] += jnp.sum(x * x, axis=1, keepdims=True)
    sk_ref[...] += jnp.sum(s, axis=1, keepdims=True)
    skk_ref[...] += jnp.sum(s * s, axis=1, keepdims=True)


def _row_stats(x2, skip2, tr, tc):
    nr, hw = x2.shape
    grid = (nr // tr, hw // tc)
    out1 = jax.ShapeDtypeStruct((nr, 1), jnp.float32)
    data_spec = pl.BlockSpec((tr, tc), lambda i, j: (i, j))
    acc_spec = pl.BlockSpec((tr, 1), lambda i, j: (i, 0))
    return pl.pallas_call(
        _stats_kernel,
        out_shape=(out1, out1, out1, out1),
        grid=grid,
        in_specs=[data_spec, data_spec],
        out_specs=(acc_spec, acc_spec, acc_spec, acc_spec),
        compiler_params=_compiler_params(("parallel", "arbitrary"), 2,
                                         tr, tc, x2.dtype.itemsize),
    )(x2, skip2)


# ---------------------------------------------------------------------------
# Pass 2: elementwise apply  out = func(x*a + b) * s + skip   (native dtype).
# Fully parallel grid, output aliased onto x.
# ---------------------------------------------------------------------------
def _apply_kernel(func, x_ref, skip_ref, a_ref, b_ref, s_ref, out_ref):
    x = x_ref[...]
    a = a_ref[...].astype(x.dtype)
    b = b_ref[...].astype(x.dtype)
    s = s_ref[...].astype(x.dtype)
    y = func(x * a + b)
    out_ref[...] = (y * s + skip_ref[...].astype(x.dtype)).astype(out_ref.dtype)


def _apply(func, x2, skip2, a_row, b_row, s_row, tr, tc):
    nr, hw = x2.shape
    grid = (nr // tr, hw // tc)
    data_spec = pl.BlockSpec((tr, tc), lambda i, j: (i, j))
    row_spec = pl.BlockSpec((tr, 1), lambda i, j: (i, 0))
    return pl.pallas_call(
        functools.partial(_apply_kernel, func),
        out_shape=jax.ShapeDtypeStruct(x2.shape, x2.dtype),
        grid=grid,
        in_specs=[data_spec, data_spec, row_spec, row_spec, row_spec],
        out_specs=data_spec,
        input_output_aliases={0: 0},           # x is dead after normalization
        compiler_params=_compiler_params(("parallel", "parallel"), 3,
                                         tr, tc, x2.dtype.itemsize),
    )(x2, skip2, a_row, b_row, s_row)


def _skip_kernel(func, x_ref, skip_ref, out_ref):
    x = x_ref[...]
    out_ref[...] = (func(x) + skip_ref[...].astype(x.dtype)).astype(out_ref.dtype)


def _apply_skip(func, x2, skip2, tr, tc):
    nr, hw = x2.shape
    grid = (nr // tr, hw // tc)
    data_spec = pl.BlockSpec((tr, tc), lambda i, j: (i, j))
    return pl.pallas_call(
        functools.partial(_skip_kernel, func),
        out_shape=jax.ShapeDtypeStruct(x2.shape, x2.dtype),
        grid=grid,
        in_specs=[data_spec, data_spec],
        out_specs=data_spec,
        input_output_aliases={0: 0},
        compiler_params=_compiler_params(("parallel", "parallel"), 3,
                                         tr, tc, x2.dtype.itemsize),
    )(x2, skip2)


# ---------------------------------------------------------------------------
# Forward wrappers (jitted so the O(N+C) finalize fuses with the two calls).
# ---------------------------------------------------------------------------
@functools.partial(jax.jit, static_argnames=("func",))
def _forward_adn(x, skip, gamma, beta, phi_w, phi_b, *, func):
    n, c, h, w = x.shape
    hw = h * w
    nr = n * c
    x2 = x.reshape(nr, hw)
    skip2 = skip.reshape(nr, hw)
    tr = _pick_tile(nr, _row_unit(x.dtype.itemsize), _ROW_TILE_CAP)
    tc = _pick_tile(hw, 128, _COL_TILE_CAP)
    # TODO(synk): HW that is both larger than the tile cap and not a multiple
    # of 128 falls back to a full-width lane block; masked edge tiles would be
    # needed to tile that (non-power-of-2 spatial) case.

    sx, sxx, sk, skk = _row_stats(x2, skip2, tr, tc)

    # ---- O(N + C) finalize in plain JAX -----------------------------------
    sx = sx.reshape(n, c)
    sxx = sxx.reshape(n, c)
    sk = sk.reshape(n, c)
    skk = skk.reshape(n, c)

    # per-sample unbiased std of skip over (C, H, W), then phi (scalar affine)
    cnt_s = c * hw
    mean_s = jnp.sum(sk, axis=1) / cnt_s
    var_s = jnp.maximum(jnp.sum(skk, axis=1) - cnt_s * mean_s * mean_s, 0.0)
    var_s = var_s / (cnt_s - 1)
    s = jnp.sqrt(var_s) * phi_w + phi_b                                   # (N,)

    # per-channel BatchNorm (batch stats, biased var, eps=1e-5) folded into a
    # single per-channel scale/shift:  gamma*(x-mu)/sqrt(var+eps)+beta == x*a_c + b_c
    cnt_c = n * hw
    mean_c = jnp.sum(sx, axis=0) / cnt_c
    var_c = jnp.maximum(jnp.sum(sxx, axis=0) / cnt_c - mean_c * mean_c, 0.0)
    a_c = gamma * jax.lax.rsqrt(var_c + _EPS)                             # (C,)
    b_c = beta - mean_c * a_c                                             # (C,)

    # per-row coefficient vectors (row = n*C + c)
    a_row = jnp.tile(a_c, n).reshape(nr, 1).astype(jnp.float32)
    b_row = jnp.tile(b_c, n).reshape(nr, 1).astype(jnp.float32)
    s_row = jnp.repeat(s, c).reshape(nr, 1).astype(jnp.float32)

    out2 = _apply(func, x2, skip2, a_row, b_row, s_row, tr, tc)
    return out2.reshape(n, c, h, w), s.reshape(n, 1, 1, 1)


@functools.partial(jax.jit, static_argnames=("func",))
def _forward_skip_mode(x, skip, *, func):
    n, c, h, w = x.shape
    nr, hw = n * c, h * w
    x2 = x.reshape(nr, hw)
    skip2 = skip.reshape(nr, hw)
    tr = _pick_tile(nr, _row_unit(x.dtype.itemsize), _ROW_TILE_CAP)
    tc = _pick_tile(hw, 128, _COL_TILE_CAP)
    return _apply_skip(func, x2, skip2, tr, tc).reshape(n, c, h, w)


class AdaptiveNormalization:
    """JAX/Pallas port of the PyTorch AdaptiveNormalization module."""

    def __init__(self, filters, skip_mode=False):
        self.skip_mode = skip_mode
        self.filters = filters
        if not skip_mode:
            # nn.BatchNorm2d(filters) default init: weight=1, bias=0.
            self.gamma = jnp.ones((filters,), jnp.float32)
            self.beta = jnp.zeros((filters,), jnp.float32)
            # nn.Conv2d(1, 1, 1, 1, 0): weight.fill_(1.5), bias.fill_(0).
            self.phi_w = jnp.asarray(1.5, jnp.float32)
            self.phi_b = jnp.asarray(0.0, jnp.float32)

    def __call__(self, x, func, skip):
        if self.skip_mode:
            return _forward_skip_mode(x, skip, func=func)
        out, s = _forward_adn(x, skip, self.gamma, self.beta,
                              self.phi_w, self.phi_b, func=func)
        self.s = s   # parity with the PyTorch module's `self.s` attribute
        return out


# ---------------------------------------------------------------------------
# Reference + self-test
# ---------------------------------------------------------------------------
def _reference(x, skip, func, gamma, beta, phi_w, phi_b):
    s = jnp.std(skip, axis=(1, 2, 3), keepdims=True, ddof=1)
    s = s * phi_w + phi_b
    mu = jnp.mean(x, axis=(0, 2, 3), keepdims=True)
    var = jnp.var(x, axis=(0, 2, 3), keepdims=True)
    x_hat = (x - mu) * jax.lax.rsqrt(var + _EPS)
    x_bn = x_hat * gamma.reshape(1, -1, 1, 1) + beta.reshape(1, -1, 1, 1)
    return func(x_bn) * s + skip


if __name__ == "__main__":
    key = jax.random.PRNGKey(0)
    kx, ks = jax.random.split(key)
    N, C, H, W = 2, 4, 16, 16
    x = jax.random.normal(kx, (N, C, H, W), dtype=jnp.float32)
    skip = jax.random.normal(ks, (N, C, H, W), dtype=jnp.float32)
    func = jax.nn.relu  # the `func` argument of forward()

    # skip_mode=False path (the interesting one).
    adn = AdaptiveNormalization(C, skip_mode=False)
    ref = _reference(x, skip, func, adn.gamma, adn.beta, adn.phi_w, adn.phi_b)
    out = jax.block_until_ready(adn(x, func, skip))
    assert out.shape == (N, C, H, W)
    assert jnp.allclose(out, ref, atol=5e-5, rtol=5e-5), "mismatch vs reference"

    # skip_mode=True path.
    adn_skip = AdaptiveNormalization(C, skip_mode=True)
    ref_skip = func(x) + skip
    out_s = jax.block_until_ready(adn_skip(x, func, skip))
    assert jnp.allclose(out_s, ref_skip, atol=1e-6), "skip_mode mismatch"

    print("KERNEL_OK")
</pallas_src>

<mosaic_0001>
module attributes {stable_mosaic.version = 11 : i64} {
  func.func @_stats_kernel(%arg0: i32, %arg1: i32, %arg2: memref<8x256xf32, #tpu.memory_space<vmem>>, %arg3: memref<8x256xf32, #tpu.memory_space<vmem>>, %arg4: memref<8x1xf32, #tpu.memory_space<vmem>>, %arg5: memref<8x1xf32, #tpu.memory_space<vmem>>, %arg6: memref<8x1xf32, #tpu.memory_space<vmem>>, %arg7: memref<8x1xf32, #tpu.memory_space<vmem>>) attributes {dimension_semantics = [#tpu.dimension_semantics<parallel>, #tpu.dimension_semantics<arbitrary>], iteration_bounds = array<i64: 1, 1>, scalar_prefetch = 0 : i64, scratch_operands = 0 : i64, tpu.core_type = #tpu.core_type<tc>, window_params = [{transform_indices = @transform_0, window_bounds = array<i64: 8, 256>}, {transform_indices = @transform_1, window_bounds = array<i64: 8, 256>}, {transform_indices = @transform_2, window_bounds = array<i64: 8, 1>}, {transform_indices = @transform_3, window_bounds = array<i64: 8, 1>}, {transform_indices = @transform_4, window_bounds = array<i64: 8, 1>}, {transform_indices = @transform_5, window_bounds = array<i64: 8, 1>}]} {
    %c0_i32 = arith.constant 0 : i32
    %0 = arith.cmpi eq, %arg1, %c0_i32 : i32
    %1 = arith.extui %0 : i1 to i32
    %c0_i32_0 = arith.constant 0 : i32
    %2 = arith.cmpi ne, %1, %c0_i32_0 : i32
    scf.if %2 {
      %cst_23 = arith.constant 0.000000e+00 : f32
      %27 = vector.broadcast %cst_23 : f32 to vector<8x1xf32>
      %c0_24 = arith.constant 0 : index
      %c0_25 = arith.constant 0 : index
      %28 = vector.load %arg4[%c0_24, %c0_25] : memref<8x1xf32, #tpu.memory_space<vmem>>, vector<8x1xf32>
      tpu.vector_store %arg4[%c0_24, %c0_25], %27 {strides = array<i32>} : memref<8x1xf32, #tpu.memory_space<vmem>>, vector<8x1xf32>,
      %cst_26 = arith.constant 0.000000e+00 : f32
      %29 = vector.broadcast %cst_26 : f32 to vector<8x1xf32>
      %c0_27 = arith.constant 0 : index
      %c0_28 = arith.constant 0 : index
      %30 = vector.load %arg5[%c0_27, %c0_28] : memref<8x1xf32, #tpu.memory_space<vmem>>, vector<8x1xf32>
      tpu.vector_store %arg5[%c0_27, %c0_28], %29 {strides = array<i32>} : memref<8x1xf32, #tpu.memory_space<vmem>>, vector<8x1xf32>,
      %cst_29 = arith.constant 0.000000e+00 : f32
      %31 = vector.broadcast %cst_29 : f32 to vector<8x1xf32>
      %c0_30 = arith.constant 0 : index
      %c0_31 = arith.constant 0 : index
      %32 = vector.load %arg6[%c0_30, %c0_31] : memref<8x1xf32, #tpu.memory_space<vmem>>, vector<8x1xf32>
      tpu.vector_store %arg6[%c0_30, %c0_31], %31 {strides = array<i32>} : memref<8x1xf32, #tpu.memory_space<vmem>>, vector<8x1xf32>,
      %cst_32 = arith.constant 0.000000e+00 : f32
      %33 = vector.broadcast %cst_32 : f32 to vector<8x1xf32>
      %c0_33 = arith.constant 0 : index
      %c0_34 = arith.constant 0 : index
      %34 = vector.load %arg7[%c0_33, %c0_34] : memref<8x1xf32, #tpu.memory_space<vmem>>, vector<8x1xf32>
      tpu.vector_store %arg7[%c0_33, %c0_34], %33 {strides = array<i32>} : memref<8x1xf32, #tpu.memory_space<vmem>>, vector<8x1xf32>,
    } else {
    }
    %c0 = arith.constant 0 : index
    %c0_1 = arith.constant 0 : index
    %3 = vector.load %arg2[%c0, %c0_1] : memref<8x256xf32, #tpu.memory_space<vmem>>, vector<8x256xf32>
    %c0_2 = arith.constant 0 : index
    %c0_3 = arith.constant 0 : index
    %4 = vector.load %arg3[%c0_2, %c0_3] : memref<8x256xf32, #tpu.memory_space<vmem>>, vector<8x256xf32>
    %c0_4 = arith.constant 0 : index
    %c0_5 = arith.constant 0 : index
    %5 = vector.load %arg4[%c0_4, %c0_5] : memref<8x1xf32, #tpu.memory_space<vmem>>, vector<8x1xf32>
    %cst = arith.constant dense<0.000000e+00> : vector<8xf32>
    %6 = vector.multi_reduction <add>, %3, %cst [1] : vector<8x256xf32> to vector<8xf32>
    %7 = vector.shape_cast %6 : vector<8xf32> to vector<8x1xf32>
    %8 = arith.addf %5, %7 : vector<8x1xf32>
    %c0_6 = arith.constant 0 : index
    %c0_7 = arith.constant 0 : index
    %9 = vector.load %arg4[%c0_6, %c0_7] : memref<8x1xf32, #tpu.memory_space<vmem>>, vector<8x1xf32>
    tpu.vector_store %arg4[%c0_6, %c0_7], %8 {strides = array<i32>} : memref<8x1xf32, #tpu.memory_space<vmem>>, vector<8x1xf32>,
    %c0_8 = arith.constant 0 : index
    %c0_9 = arith.constant 0 : index
    %10 = vector.load %arg5[%c0_8, %c0_9] : memref<8x1xf32, #tpu.memory_space<vmem>>, vector<8x1xf32>
    %11 = arith.mulf %3, %3 : vector<8x256xf32>
    %cst_10 = arith.constant dense<0.000000e+00> : vector<8xf32>
    %12 = vector.multi_reduction <add>, %11, %cst_10 [1] : vector<8x256xf32> to vector<8xf32>
    %13 = vector.shape_cast %12 : vector<8xf32> to vector<8x1xf32>
    %14 = arith.addf %10, %13 : vector<8x1xf32>
    %c0_11 = arith.constant 0 : index
    %c0_12 = arith.constant 0 : index
    %15 = vector.load %arg5[%c0_11, %c0_12] : memref<8x1xf32, #tpu.memory_space<vmem>>, vector<8x1xf32>
    tpu.vector_store %arg5[%c0_11, %c0_12], %14 {strides = array<i32>} : memref<8x1xf32, #tpu.memory_space<vmem>>, vector<8x1xf32>,
    %c0_13 = arith.constant 0 : index
    %c0_14 = arith.constant 0 : index
    %16 = vector.load %arg6[%c0_13, %c0_14] : memref<8x1xf32, #tpu.memory_space<vmem>>, vector<8x1xf32>
    %cst_15 = arith.constant dense<0.000000e+00> : vector<8xf32>
    %17 = vector.multi_reduction <add>, %4, %cst_15 [1] : vector<8x256xf32> to vector<8xf32>
    %18 = vector.shape_cast %17 : vector<8xf32> to vector<8x1xf32>
    %19 = arith.addf %16, %18 : vector<8x1xf32>
    %c0_16 = arith.constant 0 : index
    %c0_17 = arith.constant 0 : index
    %20 = vector.load %arg6[%c0_16, %c0_17] : memref<8x1xf32, #tpu.memory_space<vmem>>, vector<8x1xf32>
    tpu.vector_store %arg6[%c0_16, %c0_17], %19 {strides = array<i32>} : memref<8x1xf32, #tpu.memory_space<vmem>>, vector<8x1xf32>,
    %c0_18 = arith.constant 0 : index
    %c0_19 = arith.constant 0 : index
    %21 = vector.load %arg7[%c0_18, %c0_19] : memref<8x1xf32, #tpu.memory_space<vmem>>, vector<8x1xf32>
    %22 = arith.mulf %4, %4 : vector<8x256xf32>
    %cst_20 = arith.constant dense<0.000000e+00> : vector<8xf32>
    %23 = vector.multi_reduction <add>, %22, %cst_20 [1] : vector<8x256xf32> to vector<8xf32>
    %24 = vector.shape_cast %23 : vector<8xf32> to vector<8x1xf32>
    %25 = arith.addf %21, %24 : vector<8x1xf32>
    %c0_21 = arith.constant 0 : index
    %c0_22 = arith.constant 0 : index
    %26 = vector.load %arg7[%c0_21, %c0_22] : memref<8x1xf32, #tpu.memory_space<vmem>>, vector<8x1xf32>
    tpu.vector_store %arg7[%c0_21, %c0_22], %25 {strides = array<i32>} : memref<8x1xf32, #tpu.memory_space<vmem>>, vector<8x1xf32>,
    return
  }
  func.func @transform_0(%arg0: i32, %arg1: i32) -> (i32, i32) {
    %c0_i32 = arith.constant 0 : i32
    return %arg0, %arg1 : i32, i32
  }
  func.func @transform_1(%arg0: i32, %arg1: i32) -> (i32, i32) {
    %c0_i32 = arith.constant 0 : i32
    return %arg0, %arg1 : i32, i32
  }
  func.func @transform_2(%arg0: i32, %arg1: i32) -> (i32, i32) {
    %c0_i32 = arith.constant 0 : i32
    %c0_i32_0 = arith.constant 0 : i32
    return %arg0, %c0_i32 : i32, i32
  }
  func.func @transform_3(%arg0: i32, %arg1: i32) -> (i32, i32) {
    %c0_i32 = arith.constant 0 : i32
    %c0_i32_0 = arith.constant 0 : i32
    return %arg0, %c0_i32 : i32, i32
  }
  func.func @transform_4(%arg0: i32, %arg1: i32) -> (i32, i32) {
    %c0_i32 = arith.constant 0 : i32
    %c0_i32_0 = arith.constant 0 : i32
    return %arg0, %c0_i32 : i32, i32
  }
  func.func @transform_5(%arg0: i32, %arg1: i32) -> (i32, i32) {
    %c0_i32 = arith.constant 0 : i32
    %c0_i32_0 = arith.constant 0 : i32
    return %arg0, %c0_i32 : i32, i32
  }
}

module attributes {stable_mosaic.version = 11 : i64} {
  func.func @_apply_kernel(%arg0: i32, %arg1: i32, %arg2: memref<8x256xf32, #tpu.memory_space<vmem>>, %arg3: memref<8x256xf32, #tpu.memory_space<vmem>>, %arg4: memref<8x1xf32, #tpu.memory_space<vmem>>, %arg5: memref<8x1xf32, #tpu.memory_space<vmem>>, %arg6: memref<8x1xf32, #tpu.memory_space<vmem>>, %arg7: memref<8x256xf32, #tpu.memory_space<vmem>>) attributes {dimension_semantics = [#tpu.dimension_semantics<parallel>, #tpu.dimension_semantics<parallel>], iteration_bounds = array<i64: 1, 1>, scalar_prefetch = 0 : i64, scratch_operands = 0 : i64, tpu.core_type = #tpu.core_type<tc>, window_params = [{transform_indices = @transform_0, window_bounds = array<i64: 8, 256>}, {transform_indices = @transform_1, window_bounds = array<i64: 8, 256>}, {transform_indices = @transform_2, window_bounds = array<i64: 8, 1>}, {transform_indices = @transform_3, window_bounds = array<i64: 8, 1>}, {transform_indices = @transform_4, window_bounds = array<i64: 8, 1>}, {transform_indices = @transform_5, window_bounds = array<i64: 8, 256>}]} {
    %c0 = arith.constant 0 : index
    %c0_0 = arith.constant 0 : index
    %0 = vector.load %arg2[%c0, %c0_0] : memref<8x256xf32, #tpu.memory_space<vmem>>, vector<8x256xf32>
    %c0_1 = arith.constant 0 : index
    %c0_2 = arith.constant 0 : index
    %1 = vector.load %arg4[%c0_1, %c0_2] : memref<8x1xf32, #tpu.memory_space<vmem>>, vector<8x1xf32>
    %c0_3 = arith.constant 0 : index
    %c0_4 = arith.constant 0 : index
    %2 = vector.load %arg5[%c0_3, %c0_4] : memref<8x1xf32, #tpu.memory_space<vmem>>, vector<8x1xf32>
    %c0_5 = arith.constant 0 : index
    %c0_6 = arith.constant 0 : index
    %3 = vector.load %arg6[%c0_5, %c0_6] : memref<8x1xf32, #tpu.memory_space<vmem>>, vector<8x1xf32>
    %4 = vector.broadcast %1 : vector<8x1xf32> to vector<8x256xf32>
    %5 = arith.mulf %0, %4 : vector<8x256xf32>
    %6 = vector.broadcast %2 : vector<8x1xf32> to vector<8x256xf32>
    %7 = arith.addf %5, %6 : vector<8x256xf32>
    %cst = arith.constant 0.000000e+00 : f32
    %8 = vector.broadcast %cst : f32 to vector<8x256xf32>
    %9 = arith.maximumf %7, %8 : vector<8x256xf32>
    %10 = vector.broadcast %3 : vector<8x1xf32> to vector<8x256xf32>
    %11 = arith.mulf %9, %10 : vector<8x256xf32>
    %c0_7 = arith.constant 0 : index
    %c0_8 = arith.constant 0 : index
    %12 = vector.load %arg3[%c0_7, %c0_8] : memref<8x256xf32, #tpu.memory_space<vmem>>, vector<8x256xf32>
    %13 = arith.addf %11, %12 : vector<8x256xf32>
    %c0_9 = arith.constant 0 : index
    %c0_10 = arith.constant 0 : index
    %14 = vector.load %arg7[%c0_9, %c0_10] : memref<8x256xf32, #tpu.memory_space<vmem>>, vector<8x256xf32>
    tpu.vector_store %arg7[%c0_9, %c0_10], %13 {strides = array<i32>} : memref<8x256xf32, #tpu.memory_space<vmem>>, vector<8x256xf32>,
    return
  }
  func.func @transform_0(%arg0: i32, %arg1: i32) -> (i32, i32) {
    %c0_i32 = arith.constant 0 : i32
    return %arg0, %arg1 : i32, i32
  }
  func.func @transform_1(%arg0: i32, %arg1: i32) -> (i32, i32) {
    %c0_i32 = arith.constant 0 : i32
    return %arg0, %arg1 : i32, i32
  }
  func.func @transform_2(%arg0: i32, %arg1: i32) -> (i32, i32) {
    %c0_i32 = arith.constant 0 : i32
    %c0_i32_0 = arith.constant 0 : i32
    return %arg0, %c0_i32 : i32, i32
  }
  func.func @transform_3(%arg0: i32, %arg1: i32) -> (i32, i32) {
    %c0_i32 = arith.constant 0 : i32
    %c0_i32_0 = arith.constant 0 : i32
    return %arg0, %c0_i32 : i32, i32
  }
  func.func @transform_4(%arg0: i32, %arg1: i32) -> (i32, i32) {
    %c0_i32 = arith.constant 0 : i32
    %c0_i32_0 = arith.constant 0 : i32
    return %arg0, %c0_i32 : i32, i32
  }
  func.func @transform_5(%arg0: i32, %arg1: i32) -> (i32, i32) {
    %c0_i32 = arith.constant 0 : i32
    return %arg0, %arg1 : i32, i32
  }
}

</mosaic_0001>

<llo_original>
// kernel: tile.18
$region0: #{tile.18}
  #allocation0 [shape = 's32[1]{0}', space=sflag, size = 0x4, scoped, tag = 'scoped memory for tile.18']
  %s0 = inlined_call_operand.vmem [shape: f32[4], index: 0, kind: input, shape index: {}]
  %s1 = inlined_call_operand.vmem [shape: f32[2,4], index: 1, kind: output, shape index: {}]
  // Predicated region
  $region2: #{tile.18} parent=0 // pred_check
    _
  $region3: #{tile.18} parent=0 // pred_check_branch
    %3 = sbr.rel (0) target = $region5
  $region4: #{tile.18} parent=0 // pred_region
    _
  $region5: #{tile.18} parent=0 // pred_fallthru
    _
  %v4 = vld [vmem:[%s0] ss:$0 sm:$0xff]
  %5 = vst [vmem:[%s1] sm:$0x3] %v4

// kernel: tile.0
$region0: #{tile.0}
  %s0 = inlined_call_operand.vmem [shape: f32[2,4], index: 0, kind: input, shape index: {}]
  %s1 = inlined_call_operand.vmem [shape: f32[8,1], index: 1, kind: output, shape index: {}]
  $region1: #{tile.0} parent=0
    #allocation0 [shape = 'u8[4096]{0}', space=vmem, size = 0x1000, scoped, tag = 'scoped mem for input reshape']
    %s3 = ssub.s32 4, 1
    %v4 = vld [vmem:[%s0] sm:%s3]
    %5 = vst [vmem:[#allocation0] sm:%s3] %v4
    %v6 = vld [vmem:[#allocation0] sm:$0x3]
    %vm7 = vcmask 7168
    %8 = vst.msk [vmem:[%s1] ss:$4 sm:$0x3] %vm7, %v6
    %v9 = vld [vmem:[#allocation0] sm:$0x3]
    %10 = vrot.lane.b32.xlu0 %v9, 127
    %v11 = vpop.permute.xlu0 %10
    %vm12 = vcmask 7168
    %s13 = scalar_lea.vmem %s1, 1
    %14 = vst.msk [vmem:[%s13] ss:$4 sm:$0x3] %vm12, %v11
    %v15 = vld [vmem:[#allocation0] sm:$0x3]
    %16 = vrot.lane.b32.xlu0 %v15, 126
    %v17 = vpop.permute.xlu0 %16
    %vm18 = vcmask 7168
    %s19 = scalar_lea.vmem %s1, 2
    %20 = vst.msk [vmem:[%s19] ss:$4 sm:$0x3] %vm18, %v17
    %v21 = vld [vmem:[#allocation0] sm:$0x3]
    %22 = vrot.lane.b32.xlu0 %v21, 125
    %v23 = vpop.permute.xlu0 %22
    %vm24 = vcmask 7168
    %s25 = scalar_lea.vmem %s1, 3
    %26 = vst.msk [vmem:[%s25] ss:$4 sm:$0x3] %vm24, %v23

// kernel: _forward_adn.2
$region0: #{_forward_adn.2}
  #allocation0 [shape = 'u32[]', space=smem, size = 0x4, offset = 0x4, fixed_abs, tag = 'smem constant byte address 0x4 - core index']
  #allocation1 [shape = 'u32[72,128]{1,0:T(1,128)}', space=vmem, size = 0x9000, scoped, tag = 'internal scratch']
  %s0 = inlined_call_operand.vmem [shape: f32[8,256], index: 0, kind: input, shape index: {}]
  %s1 = inlined_call_operand.vmem [shape: f32[8,256], index: 1, kind: input, shape index: {}]
  %s2 = inlined_call_operand.vmem [shape: f32[8,1], index: 2, kind: output, shape index: {0}]
  %s3 = inlined_call_operand.vmem [shape: f32[8,1], index: 3, kind: output, shape index: {1}]
  %s4 = inlined_call_operand.vmem [shape: f32[8,1], index: 4, kind: output, shape index: {2}]
  %s5 = inlined_call_operand.vmem [shape: f32[8,1], index: 5, kind: output, shape index: {3}]
  %6 = xla_tuple %s2, %s3, %s4, %s5
  %s7 = sld [smem:[#allocation0]]
  $region46: #{_forward_adn.2} parent=0
    _
  %s9 = ssub.s32 1, %s7
  %s10 = scalar_select 0, %s9, %s7
  // Predicated region
  $region2: #{_forward_adn.2} parent=0 // pred_check
    _
  $region3: #{_forward_adn.2} parent=0 // pred_check_branch
    %12 = sbr.rel (0) target = $region5
  $region4: #{_forward_adn.2} parent=0 // pred_region
    _
  $region5: #{_forward_adn.2} parent=0 // pred_fallthru
    _
  // Predicated region
  $region6: #{_forward_adn.2} parent=0 // pred_check
    _
  $region7: #{_forward_adn.2} parent=0 // pred_check_branch
    %14 = sbr.rel (0) target = $region9
  $region8: #{_forward_adn.2} parent=0 // pred_region
    _
  $region9: #{_forward_adn.2} parent=0 // pred_fallthru
    _
  %p15 = scmp.eq.s32.totalorder 0, 0
  // Predicated region
  $region10: #{_forward_adn.2} parent=0 // pred_check
    %p16 = pneg %p15
  $region11: #{_forward_adn.2} parent=0 // pred_check_branch
    %18 = sbr.rel (%p16) target = $region13
  $region12: #{_forward_adn.2} parent=0 // pred_region
    %vm19 = vcmask 7168
    %20 = vst.msk [vmem:[%s2] sm:$0xff] %vm19, 0.0
    %21 = vst.msk [vmem:[%s3] sm:$0xff] %vm19, 0.0
    %22 = vst.msk [vmem:[%s4] sm:$0xff] %vm19, 0.0
    %23 = vst.msk [vmem:[%s5] sm:$0xff] %vm19, 0.0
  $region13: #{_forward_adn.2} parent=0 // pred_fallthru
    _
  %v24 = vld [vmem:[%s0] sm:$0xff]
  %v25 = vld [vmem:[%s0 + $0x8] sm:$0xff]
  %v26 = vld [vmem:[%s1] sm:$0xff]
  %v27 = vld [vmem:[%s1 + $0x8] sm:$0xff]
  %v28 = vld [vmem:[%s2] sm:$0xff]
  %v29 = vadd.f32 %v24, %v25
  %30 = vadd.xlane.f32.xlu0 %v29
  %v31 = vpop.xlane.xlu0 %30
  %v32 = vadd.f32 %v28, %v31
  %vm33 = vcmask 7168
  %34 = vst.msk [vmem:[%s2] sm:$0xff] %vm33, %v32
  %v35 = vld [vmem:[%s3] sm:$0xff]
  %v36 = vmul.f32 %v24, %v24
  %v37 = vmul.f32 %v25, %v25
  %v38 = vadd.f32 %v36, %v37
  %39 = vadd.xlane.f32.xlu0 %v38
  %v40 = vpop.xlane.xlu0 %39
  %v41 = vadd.f32 %v35, %v40
  %42 = vst.msk [vmem:[%s3] sm:$0xff] %vm33, %v41
  %v43 = vld [vmem:[%s4] sm:$0xff]
  %v44 = vadd.f32 %v26, %v27
  %45 = vadd.xlane.f32.xlu0 %v44
  %v46 = vpop.xlane.xlu0 %45
  %v47 = vadd.f32 %v43, %v46
  %48 = vst.msk [vmem:[%s4] sm:$0xff] %vm33, %v47
  %v49 = vld [vmem:[%s5] sm:$0xff]
  %v50 = vmul.f32 %v26, %v26
  %v51 = vmul.f32 %v27, %v27
  %v52 = vadd.f32 %v50, %v51
  %53 = vadd.xlane.f32.xlu0 %v52
  %v54 = vpop.xlane.xlu0 %53
  %v55 = vadd.f32 %v49, %v54
  %56 = vst.msk [vmem:[%s5] sm:$0xff] %vm33, %v55
  // Predicated region
  $region14: #{_forward_adn.2} parent=0 // pred_check
    _
  $region15: #{_forward_adn.2} parent=0 // pred_check_branch
    %58 = sbr.rel (0) target = $region17
  $region16: #{_forward_adn.2} parent=0 // pred_region
    _
  $region17: #{_forward_adn.2} parent=0 // pred_fallthru
    _
  // Predicated region
  $region18: #{_forward_adn.2} parent=0 // pred_check
    _
  $region19: #{_forward_adn.2} parent=0 // pred_check_branch
    %60 = sbr.rel (0) target = $region21
  $region20: #{_forward_adn.2} parent=0 // pred_region
    _
  $region21: #{_forward_adn.2} parent=0 // pred_fallthru
    _
  // Predicated region
  $region22: #{_forward_adn.2} parent=0 // pred_check
    _
  $region23: #{_forward_adn.2} parent=0 // pred_check_branch
    %62 = sbr.rel (0) target = $region25
  $region24: #{_forward_adn.2} parent=0 // pred_region
    _
  $region25: #{_forward_adn.2} parent=0 // pred_fallthru
    _
  // Predicated region
  $region26: #{_forward_adn.2} parent=0 // pred_check
    _
  $region27: #{_forward_adn.2} parent=0 // pred_check_branch
    %64 = sbr.rel (0) target = $region29
  $region28: #{_forward_adn.2} parent=0 // pred_region
    _
  $region29: #{_forward_adn.2} parent=0 // pred_fallthru
    _
  // Predicated region
  $region30: #{_forward_adn.2} parent=0 // pred_check
    _
  $region31: #{_forward_adn.2} parent=0 // pred_check_branch
    %66 = sbr.rel (0) target = $region33
  $region32: #{_forward_adn.2} parent=0 // pred_region
    _
  $region33: #{_forward_adn.2} parent=0 // pred_fallthru
    _
  // Predicated region
  $region34: #{_forward_adn.2} parent=0 // pred_check
    _
  $region35: #{_forward_adn.2} parent=0 // pred_check_branch
    %68 = sbr.rel (0) target = $region37
  $region36: #{_forward_adn.2} parent=0 // pred_region
    _
  $region37: #{_forward_adn.2} parent=0 // pred_fallthru
    _
  // Predicated region
  $region38: #{_forward_adn.2} parent=0 // pred_check
    _
  $region39: #{_forward_adn.2} parent=0 // pred_check_branch
    %70 = sbr.rel (0) target = $region41
  $region40: #{_forward_adn.2} parent=0 // pred_region
    _
  $region41: #{_forward_adn.2} parent=0 // pred_fallthru
    _
  // Predicated region
  $region42: #{_forward_adn.2} parent=0 // pred_check
    _
  $region43: #{_forward_adn.2} parent=0 // pred_check_branch
    %72 = sbr.rel (0) target = $region45
  $region44: #{_forward_adn.2} parent=0 // pred_region
    _
  $region45: #{_forward_adn.2} parent=0 // pred_fallthru
    _

// kernel: _forward_adn.3
$region0: #{_forward_adn.3}
  #allocation0 [shape = 'u32[]', space=smem, size = 0x4, offset = 0x4, fixed_abs, tag = 'smem constant byte address 0x4 - core index']
  #allocation1 [shape = 'u32[72,128]{1,0:T(1,128)}', space=vmem, size = 0x9000, scoped, tag = 'internal scratch']
  %s0 = inlined_call_operand.vmem [shape: f32[8,256], index: 0, kind: input, shape index: {}, may-alias: {0,5}]
  %s1 = inlined_call_operand.vmem [shape: f32[8,256], index: 1, kind: input, shape index: {}]
  %s2 = inlined_call_operand.vmem [shape: f32[8,1], index: 2, kind: input, shape index: {}]
  %s3 = inlined_call_operand.vmem [shape: f32[8,1], index: 3, kind: input, shape index: {}]
  %s4 = inlined_call_operand.vmem [shape: f32[8,1], index: 4, kind: input, shape index: {}]
  %s5 = inlined_call_operand.vmem [shape: f32[8,256], index: 5, kind: output, shape index: {}, may-alias: {0,5}]
  %s6 = sld [smem:[#allocation0]]
  $region30: #{_forward_adn.3} parent=0
    _
  %s8 = ssub.s32 1, %s6
  %s9 = scalar_select 0, %s8, %s6
  // Predicated region
  $region2: #{_forward_adn.3} parent=0 // pred_check
    _
  $region3: #{_forward_adn.3} parent=0 // pred_check_branch
    %11 = sbr.rel (0) target = $region5
  $region4: #{_forward_adn.3} parent=0 // pred_region
    _
  $region5: #{_forward_adn.3} parent=0 // pred_fallthru
    _
  // Predicated region
  $region6: #{_forward_adn.3} parent=0 // pred_check
    _
  $region7: #{_forward_adn.3} parent=0 // pred_check_branch
    %13 = sbr.rel (0) target = $region9
  $region8: #{_forward_adn.3} parent=0 // pred_region
    _
  $region9: #{_forward_adn.3} parent=0 // pred_fallthru
    _
  // Predicated region
  $region10: #{_forward_adn.3} parent=0 // pred_check
    _
  $region11: #{_forward_adn.3} parent=0 // pred_check_branch
    %15 = sbr.rel (0) target = $region13
  $region12: #{_forward_adn.3} parent=0 // pred_region
    _
  $region13: #{_forward_adn.3} parent=0 // pred_fallthru
    _
  // Predicated region
  $region14: #{_forward_adn.3} parent=0 // pred_check
    _
  $region15: #{_forward_adn.3} parent=0 // pred_check_branch
    %17 = sbr.rel (0) target = $region17
  $region16: #{_forward_adn.3} parent=0 // pred_region
    _
  $region17: #{_forward_adn.3} parent=0 // pred_fallthru
    _
  // Predicated region
  $region18: #{_forward_adn.3} parent=0 // pred_check
    _
  $region19: #{_forward_adn.3} parent=0 // pred_check_branch
    %19 = sbr.rel (0) target = $region21
  $region20: #{_forward_adn.3} parent=0 // pred_region
    _
  $region21: #{_forward_adn.3} parent=0 // pred_fallthru
    _
  %v20 = vld [vmem:[%s0] sm:$0xff]
  %v21 = vld [vmem:[%s0 + $0x8] sm:$0xff]
  %v22 = vld [vmem:[%s2] sm:$0xff]
  %v23 = vld [vmem:[%s3] sm:$0xff]
  %v24 = vld [vmem:[%s4] sm:$0xff]
  %26 = vset.pattern.permute.xlu0 0
  %27 = vperm.xlu0 %26, %v22
  %v28 = vpop.permute.xlu0 %27
  %v30 = vmul.f32 %v20, %v28
  %v31 = vmul.f32 %v21, %v28
  %33 = vset.pattern.permute.xlu0 0
  %34 = vperm.xlu0 %33, %v23
  %v35 = vpop.permute.xlu0 %34
  %v37 = vadd.f32 %v30, %v35
  %v38 = vadd.f32 %v31, %v35
  %v39 = vmax.f32 %v37, 0.0
  %v40 = vmax.f32 %v38, 0.0
  %42 = vset.pattern.permute.xlu0 0
  %43 = vperm.xlu0 %42, %v24
  %v44 = vpop.permute.xlu0 %43
  %v46 = vmul.f32 %v39, %v44
  %v47 = vmul.f32 %v40, %v44
  %v48 = vld [vmem:[%s1] sm:$0xff]
  %v49 = vld [vmem:[%s1 + $0x8] sm:$0xff]
  %v50 = vadd.f32 %v46, %v48
  %v51 = vadd.f32 %v47, %v49
  %52 = vst [vmem:[%s5] sm:$0xff] %v50
  %53 = vst [vmem:[%s5 + $0x8] sm:$0xff] %v51
  // Predicated region
  $region22: #{_forward_adn.3} parent=0 // pred_check
    _
  $region23: #{_forward_adn.3} parent=0 // pred_check_branch
    %55 = sbr.rel (0) target = $region25
  $region24: #{_forward_adn.3} parent=0 // pred_region
    _
  $region25: #{_forward_adn.3} parent=0 // pred_fallthru
    _
  // Predicated region
  $region26: #{_forward_adn.3} parent=0 // pred_check
    _
  $region27: #{_forward_adn.3} parent=0 // pred_check_branch
    %57 = sbr.rel (0) target = $region29
  $region28: #{_forward_adn.3} parent=0 // pred_region
    _
  $region29: #{_forward_adn.3} parent=0 // pred_fallthru
    _

</llo_original>
